<compile_context>
chip_gen: v7x
topology: tpu7x:2x2x1
jax: 0.10.0
libtpu: 0.0.40
codegen_flags: <defaults>
</compile_context>

<pallas_src>
import functools

import jax
import jax.numpy as jnp
from jax.experimental import pallas as pl
from jax.experimental.pallas import tpu as pltpu

_LANE = 128          # vreg lane width
_SUBLANE = 8         # f32 sublane tile
_SMALL_BYTES = 256 << 10   # below this, plain jnp beats any custom kernel


def _round_down(x, m):
    return (x // m) * m


def _round_up(x, m):
    return ((x + m - 1) // m) * m


def _vmem_budget():
    """(double-buffered working-set budget, vmem_limit_bytes) per generation."""
    phys = 64 << 20                                    # conservative (v7x per-TC)
    try:
        info = pltpu.get_tpu_info()
        phys = int(getattr(info, "vmem_capacity_bytes", phys)) or phys
    except Exception:                                  # no TPU / emulation quirks
        pass
    if phys >= (100 << 20):                            # v5e / v6e: 128 MiB VMEM
        budget = 80 << 20
    else:                                              # v7x: 64 MiB per TC
        budget = 24 << 20
    return budget, min(phys, budget + (8 << 20))


# --------------------------------------------------------------------------
# Kernels
# --------------------------------------------------------------------------
def _fused_kernel(x_ref, scale_ref, rm_ref, out_ref, new_rm_ref, *, inv_b):
    """Full batch resident; one strip of D columns per grid step."""
    x = x_ref[...].astype(jnp.float32)
    s = scale_ref[...]
    # Per-column batch mean: sublane sum (XLU) * trace-time 1/B (no divide).
    bm = jnp.sum(x, axis=0, keepdims=True) * inv_b                    # (1, td)
    # (x - m)*s + m  ==  x*s + m*(1-s); row term computed once per strip.
    out_ref[...] = (x * s + bm * (1.0 - s)).astype(out_ref.dtype)
    new_rm_ref[...] = 0.9 * rm_ref[...] + 0.1 * bm


def _mean_kernel(x_ref, rm_ref, mean_ref, new_rm_ref, *, inv_b, batch):
    """Pass 1 of the batch-tiled path: per-column sums over batch tiles."""
    j = pl.program_id(1)

    @pl.when(j == 0)
    def _():
        mean_ref[...] = jnp.zeros_like(mean_ref)

    x = x_ref[...].astype(jnp.float32)
    rows = jax.lax.broadcasted_iota(jnp.int32, x.shape, 0) + j * x.shape[0]
    x = jnp.where(rows < batch, x, 0.0)        # mask the ragged batch tail
    mean_ref[...] += jnp.sum(x, axis=0, keepdims=True)

    @pl.when(j == pl.num_programs(1) - 1)
    def _():
        bm = mean_ref[...] * inv_b
        mean_ref[...] = bm
        new_rm_ref[...] = 0.9 * rm_ref[...] + 0.1 * bm


def _apply_kernel(x_ref, scale_ref, mean_ref, out_ref):
    """Pass 2 of the batch-tiled path: elementwise decouple."""
    x = x_ref[...].astype(jnp.float32)
    s = scale_ref[...]
    bm = mean_ref[...]
    out_ref[...] = (x * s + bm * (1.0 - s)).astype(out_ref.dtype)


# --------------------------------------------------------------------------
# Tile selection
# --------------------------------------------------------------------------
def _pick_d_tile(B, D, x_bytes, out_bytes, budget):
    """Strip width for the fused (full-batch) path, or None if it can't fit."""
    # double-buffered bytes per column: x + out blocks plus 3 small (1,td) rows
    per_col = 2 * (B * (x_bytes + out_bytes) + 3 * 4)
    cols_fit = budget // per_col
    if cols_fit < min(D, _LANE):
        return None                            # even a (B, 128) strip won't fit
    if D <= _LANE:
        return D                               # block == full array dims (legal)
    if cols_fit >= D:
        # Whole D fits in one strip; still keep >=2 (>=4 for very wide D)
        # strips so "parallel" can shard across v7x's two TensorCores.
        n_split = 4 if D >= 4096 else (2 if D >= 2 * _LANE else 1)
        if n_split == 1:
            return D
        td = _round_up(-(-D // n_split), _LANE)
        return max(_LANE, min(_round_down(cols_fit, _LANE), td))
    return max(_LANE, _round_down(cols_fit, _LANE))


def _pick_bd_tiles(B, D, x_bytes, out_bytes, budget):
    """(tb, td) for the batch-tiled two-pass path (B too large to keep resident)."""
    td = D if D <= 4 * _LANE else 4 * _LANE            # <=512 lanes per strip
    sub = max(_SUBLANE, 32 // x_bytes)                 # 8 (f32) / 16 (bf16) / 32 (i8)
    per_row = 2 * td * (x_bytes + out_bytes)           # double-buffered bytes/row
    tb = max(sub, budget // max(per_row, 1))
    if tb >= B:
        tb = B                                          # full dim is always legal
    else:
        tb = max(sub, _round_down(tb, sub))
    return tb, td


# --------------------------------------------------------------------------
# Pallas paths
# --------------------------------------------------------------------------
def _forward_fused(x, scale2d, rm2d, td, vmem_limit):
    B, D = x.shape
    kernel = functools.partial(_fused_kernel, inv_b=1.0 / B)
    return pl.pallas_call(
        kernel,
        grid=(pl.cdiv(D, td),),
        in_specs=[
            pl.BlockSpec((B, td), lambda i: (0, i)),
            pl.BlockSpec((1, td), lambda i: (0, i)),
            pl.BlockSpec((1, td), lambda i: (0, i)),
        ],
        out_specs=(
            pl.BlockSpec((B, td), lambda i: (0, i)),
            pl.BlockSpec((1, td), lambda i: (0, i)),
        ),
        out_shape=(
            jax.ShapeDtypeStruct((B, D), x.dtype),
            jax.ShapeDtypeStruct((1, D), jnp.float32),
        ),
        # running_mean is updated "in place": new_rm reuses rm2d's HBM buffer.
        input_output_aliases={2: 1},
        compiler_params=pltpu.CompilerParams(
            dimension_semantics=("parallel",),
            vmem_limit_bytes=vmem_limit,
        ),
    )(x, scale2d, rm2d)


def _forward_batch_tiled(x, scale2d, rm2d, tb, td, vmem_limit):
    B, D = x.shape
    nd, nb = pl.cdiv(D, td), pl.cdiv(B, tb)

    mean_kernel = functools.partial(_mean_kernel, inv_b=1.0 / B, batch=B)
    batch_mean, new_rm = pl.pallas_call(
        mean_kernel,
        grid=(nd, nb),
        in_specs=[
            pl.BlockSpec((tb, td), lambda i, j: (j, i)),
            pl.BlockSpec((1, td), lambda i, j: (0, i)),
        ],
        out_specs=(
            pl.BlockSpec((1, td), lambda i, j: (0, i)),
            pl.BlockSpec((1, td), lambda i, j: (0, i)),
        ),
        out_shape=(
            jax.ShapeDtypeStruct((1, D), jnp.float32),
            jax.ShapeDtypeStruct((1, D), jnp.float32),
        ),
        input_output_aliases={1: 1},
        compiler_params=pltpu.CompilerParams(
            dimension_semantics=("parallel", "arbitrary"),
            vmem_limit_bytes=vmem_limit,
        ),
    )(x, rm2d)

    out = pl.pallas_call(
        _apply_kernel,
        grid=(nd, nb),
        in_specs=[
            pl.BlockSpec((tb, td), lambda i, j: (j, i)),
            pl.BlockSpec((1, td), lambda i, j: (0, i)),
            pl.BlockSpec((1, td), lambda i, j: (0, i)),
        ],
        out_specs=pl.BlockSpec((tb, td), lambda i, j: (j, i)),
        out_shape=jax.ShapeDtypeStruct((B, D), x.dtype),
        compiler_params=pltpu.CompilerParams(
            dimension_semantics=("parallel", "parallel"),
            vmem_limit_bytes=vmem_limit,
        ),
    )(x, scale2d, batch_mean)
    return out, new_rm


def _forward_jnp(x, scale2d, rm2d):
    xf = x.astype(jnp.float32)
    bm = jnp.mean(xf, axis=0, keepdims=True)
    out = ((xf - bm) * scale2d + bm).astype(x.dtype)
    new_rm = 0.9 * rm2d + 0.1 * bm
    return out, new_rm


# --------------------------------------------------------------------------
# Public wrapper
# --------------------------------------------------------------------------
def attr_decouple_forward(pre_attr, attr_var_scale, running_mean,
                          training=True, *, use_pallas=None,
                          vmem_budget_bytes=None):
    """JAX/Pallas equivalent of Attr_Decouple_Layer.forward.

    Args:
      pre_attr:          (B, D) float array (f32 or bf16; dtype preserved).
      attr_var_scale:    (1, D) or (D,) float32 parameter.
      running_mean:      (D,)   float32 buffer.
      training:          static Python bool.
      use_pallas:        None = auto (jnp fallback for tiny shapes), bool = force.
      vmem_budget_bytes: optional override of the working-set budget (testing).

    Returns:
      (result with pre_attr's shape/dtype, new_running_mean with running_mean's shape)
    """
    if not training:
        # Eval path is an identity; running_mean is untouched.
        return pre_attr, running_mean

    B, D = pre_attr.shape
    scale2d = attr_var_scale.reshape(1, D).astype(jnp.float32)
    rm_shape = running_mean.shape
    rm2d = running_mean.reshape(1, D).astype(jnp.float32)
    x_bytes = pre_attr.dtype.itemsize

    small = pre_attr.size * x_bytes < _SMALL_BYTES
    if use_pallas is False or (use_pallas is None and small):
        out, new_rm = _forward_jnp(pre_attr, scale2d, rm2d)
        return out, new_rm.reshape(rm_shape)

    budget, vmem_limit = _vmem_budget()
    if vmem_budget_bytes is not None:
        budget = vmem_budget_bytes
        vmem_limit = min(vmem_limit, max(budget + (4 << 20), 8 << 20))

    td = _pick_d_tile(B, D, x_bytes, x_bytes, budget)
    if td is not None:
        out, new_rm = _forward_fused(pre_attr, scale2d, rm2d, td, vmem_limit)
    else:
        # Batch too large to keep a full-batch strip resident in VMEM.
        tb, td = _pick_bd_tiles(B, D, x_bytes, x_bytes, budget)
        out, new_rm = _forward_batch_tiled(pre_attr, scale2d, rm2d, tb, td,
                                           vmem_limit)
    return out, new_rm.reshape(rm_shape)


# --------------------------------------------------------------------------
# Self-test
# --------------------------------------------------------------------------
if __name__ == "__main__":
    def _ref(x, scale, rm):
        xf = x.astype(jnp.float32)
        bm = jnp.mean(xf, axis=0, keepdims=True)
        out = ((xf - bm) * scale.reshape(1, -1) + bm).astype(x.dtype)
        return out, 0.9 * rm + 0.1 * bm[0]

    # --- production-like toy shape (attr_dim=32); Pallas path forced --------
    B, attr_dim = 8, 32
    key = jax.random.PRNGKey(0)
    k_x, k_s, k_x2 = jax.random.split(key, 3)

    pre_attr = jax.random.normal(k_x, (B, attr_dim), dtype=jnp.float32)
    attr_var_scale = jnp.ones((1, attr_dim), jnp.float32) + \
        0.1 * jax.random.normal(k_s, (1, attr_dim), dtype=jnp.float32)
    running_mean = jnp.zeros((attr_dim,), jnp.float32)

    result, new_rm = attr_decouple_forward(
        pre_attr, attr_var_scale, running_mean, training=True, use_pallas=True)
    jax.block_until_ready((result, new_rm))
    ref_out, ref_rm = _ref(pre_attr, attr_var_scale, running_mean)
    assert jnp.allclose(result, ref_out, atol=1e-5, rtol=1e-5)
    assert jnp.allclose(new_rm, ref_rm, atol=1e-5, rtol=1e-5)

    # auto path (tiny shape -> fused jnp) and eval path (identity)
    auto_out, auto_rm = attr_decouple_forward(
        pre_attr, attr_var_scale, running_mean, training=True)
    assert jnp.allclose(auto_out, ref_out, atol=1e-5, rtol=1e-5)
    assert jnp.allclose(auto_rm, ref_rm, atol=1e-5, rtol=1e-5)
    eval_out, eval_rm = attr_decouple_forward(
        pre_attr, attr_var_scale, running_mean, training=False)
    assert jnp.allclose(eval_out, pre_attr)
    assert jnp.allclose(eval_rm, running_mean)

    # --- wider attr dim: multi-strip cdiv grid with a ragged last block -----
    B2, D2 = 16, 384
    x2 = jax.random.normal(k_x2, (B2, D2), dtype=jnp.float32)
    s2 = jnp.linspace(0.5, 1.5, D2, dtype=jnp.float32).reshape(1, D2)
    rm2 = jnp.linspace(-1.0, 1.0, D2, dtype=jnp.float32)
    out2, nrm2 = attr_decouple_forward(x2, s2, rm2, training=True,
                                       use_pallas=True)
    jax.block_until_ready((out2, nrm2))
    r_out2, r_rm2 = _ref(x2, s2, rm2)
    assert jnp.allclose(out2, r_out2, atol=1e-5, rtol=1e-5)
    assert jnp.allclose(nrm2, r_rm2, atol=1e-5, rtol=1e-5)

    # --- batch-tiled two-pass path (bf16), forced via a tiny VMEM budget ----
    B3, D3 = 56, 384
    x3 = jax.random.normal(jax.random.PRNGKey(3), (B3, D3), dtype=jnp.bfloat16)
    s3 = jnp.full((1, D3), 0.7, jnp.float32) + \
        0.2 * jnp.linspace(0.0, 1.0, D3, dtype=jnp.float32).reshape(1, D3)
    rm3 = jnp.zeros((D3,), jnp.float32)
    out3, nrm3 = attr_decouple_forward(
        x3, s3, rm3, training=True, use_pallas=True,
        vmem_budget_bytes=64 << 10)
    jax.block_until_ready((out3, nrm3))
    r_out3, r_rm3 = _ref(x3, s3, rm3)
    assert out3.dtype == jnp.bfloat16
    assert jnp.allclose(out3.astype(jnp.float32), r_out3.astype(jnp.float32),
                        atol=5e-2, rtol=5e-2)
    assert jnp.allclose(nrm3, r_rm3, atol=1e-4, rtol=1e-4)

    print("KERNEL_OK")
</pallas_src>

<mosaic_0001>
module attributes {stable_mosaic.version = 11 : i64} {
  func.func @_fused_kernel(%arg0: i32, %arg1: memref<8x32xf32, #tpu.memory_space<vmem>>, %arg2: memref<1x32xf32, #tpu.memory_space<vmem>>, %arg3: memref<1x32xf32, #tpu.memory_space<vmem>>, %arg4: memref<8x32xf32, #tpu.memory_space<vmem>>, %arg5: memref<1x32xf32, #tpu.memory_space<vmem>>) attributes {dimension_semantics = [#tpu.dimension_semantics<parallel>], iteration_bounds = array<i64: 1>, scalar_prefetch = 0 : i64, scratch_operands = 0 : i64, tpu.core_type = #tpu.core_type<tc>, window_params = [{transform_indices = @transform_0, window_bounds = array<i64: 8, 32>}, {transform_indices = @transform_1, window_bounds = array<i64: 1, 32>}, {transform_indices = @transform_2, window_bounds = array<i64: 1, 32>}, {transform_indices = @transform_3, window_bounds = array<i64: 8, 32>}, {transform_indices = @transform_4, window_bounds = array<i64: 1, 32>}]} {
    %c0 = arith.constant 0 : index
    %c0_0 = arith.constant 0 : index
    %0 = vector.load %arg1[%c0, %c0_0] : memref<8x32xf32, #tpu.memory_space<vmem>>, vector<8x32xf32>
    %c0_1 = arith.constant 0 : index
    %c0_2 = arith.constant 0 : index
    %1 = vector.load %arg2[%c0_1, %c0_2] : memref<1x32xf32, #tpu.memory_space<vmem>>, vector<1x32xf32>
    %cst = arith.constant dense<0.000000e+00> : vector<32xf32>
    %2 = vector.multi_reduction <add>, %0, %cst [0] : vector<8x32xf32> to vector<32xf32>
    %3 = vector.shape_cast %2 : vector<32xf32> to vector<1x32xf32>
    %cst_3 = arith.constant 1.250000e-01 : f32
    %4 = vector.broadcast %cst_3 : f32 to vector<1x32xf32>
    %5 = arith.mulf %3, %4 : vector<1x32xf32>
    %6 = vector.broadcast %1 : vector<1x32xf32> to vector<8x32xf32>
    %7 = arith.mulf %0, %6 : vector<8x32xf32>
    %cst_4 = arith.constant 1.000000e+00 : f32
    %8 = vector.broadcast %cst_4 : f32 to vector<1x32xf32>
    %9 = arith.subf %8, %1 : vector<1x32xf32>
    %10 = arith.mulf %5, %9 : vector<1x32xf32>
    %11 = vector.broadcast %10 : vector<1x32xf32> to vector<8x32xf32>
    %12 = arith.addf %7, %11 : vector<8x32xf32>
    %c0_5 = arith.constant 0 : index
    %c0_6 = arith.constant 0 : index
    %13 = vector.load %arg4[%c0_5, %c0_6] : memref<8x32xf32, #tpu.memory_space<vmem>>, vector<8x32xf32>
    tpu.vector_store %arg4[%c0_5, %c0_6], %12 {strides = array<i32>} : memref<8x32xf32, #tpu.memory_space<vmem>>, vector<8x32xf32>,
    %c0_7 = arith.constant 0 : index
    %c0_8 = arith.constant 0 : index
    %14 = vector.load %arg3[%c0_7, %c0_8] : memref<1x32xf32, #tpu.memory_space<vmem>>, vector<1x32xf32>
    %cst_9 = arith.constant 0.899999976 : f32
    %15 = vector.broadcast %cst_9 : f32 to vector<1x32xf32>
    %16 = arith.mulf %15, %14 : vector<1x32xf32>
    %cst_10 = arith.constant 1.000000e-01 : f32
    %17 = vector.broadcast %cst_10 : f32 to vector<1x32xf32>
    %18 = arith.mulf %17, %5 : vector<1x32xf32>
    %19 = arith.addf %16, %18 : vector<1x32xf32>
    %c0_11 = arith.constant 0 : index
    %c0_12 = arith.constant 0 : index
    %20 = vector.load %arg5[%c0_11, %c0_12] : memref<1x32xf32, #tpu.memory_space<vmem>>, vector<1x32xf32>
    tpu.vector_store %arg5[%c0_11, %c0_12], %19 {strides = array<i32>} : memref<1x32xf32, #tpu.memory_space<vmem>>, vector<1x32xf32>,
    return
  }
  func.func @transform_0(%arg0: i32) -> (i32, i32) {
    %c0_i32 = arith.constant 0 : i32
    %c0_i32_0 = arith.constant 0 : i32
    return %c0_i32, %arg0 : i32, i32
  }
  func.func @transform_1(%arg0: i32) -> (i32, i32) {
    %c0_i32 = arith.constant 0 : i32
    %c0_i32_0 = arith.constant 0 : i32
    return %c0_i32, %arg0 : i32, i32
  }
  func.func @transform_2(%arg0: i32) -> (i32, i32) {
    %c0_i32 = arith.constant 0 : i32
    %c0_i32_0 = arith.constant 0 : i32
    return %c0_i32, %arg0 : i32, i32
  }
  func.func @transform_3(%arg0: i32) -> (i32, i32) {
    %c0_i32 = arith.constant 0 : i32
    %c0_i32_0 = arith.constant 0 : i32
    return %c0_i32, %arg0 : i32, i32
  }
  func.func @transform_4(%arg0: i32) -> (i32, i32) {
    %c0_i32 = arith.constant 0 : i32
    %c0_i32_0 = arith.constant 0 : i32
    return %c0_i32, %arg0 : i32, i32
  }
}

</mosaic_0001>

<llo_original>
// kernel: tpu_custom_call.1
$region0: #{tpu_custom_call.1}
  #allocation0 [shape = 'u32[]', space=smem, size = 0x4, offset = 0x4, fixed_abs, tag = 'smem constant byte address 0x4 - core index']
  #allocation1 [shape = 'u32[144,128]{1,0:T(1,128)}', space=vmem, size = 0x12000, scoped, tag = 'internal scratch']
  %s0 = inlined_call_operand.vmem [shape: f32[8,32], index: 0, kind: input, shape index: {}]
  %s1 = inlined_call_operand.vmem [shape: f32[1,32], index: 1, kind: input, shape index: {}]
  %s2 = inlined_call_operand.hbm [shape: f32[1,32], index: 2, kind: input, shape index: {}, may-alias: {2,4}]
  %s3 = inlined_call_operand.hbm [shape: f32[8,32], index: 3, kind: output, shape index: {0}]
  %s4 = inlined_call_operand.hbm [shape: f32[1,32], index: 4, kind: output, shape index: {1}, may-alias: {2,4}]
  %5 = xla_tuple %s3, %s4
  %s6 = sld [smem:[#allocation0]]
  $region34: #{tpu_custom_call.1} parent=0
    _
  %s8 = ssub.s32 1, %s6
  %s9 = scalar_select 0, %s8, %s6
  $region1: #{tpu_custom_call.1} parent=0
    #allocation2 [shape = 'u8[512]{0}', space=vmem, size = 0x400, scoped, tag = 'input window, operand 2, single buffered']
    #allocation3 [shape = 's32[1]{0}', space=sflag, size = 0x4, scoped, tag = 'scoped memory for tpu_custom_call.1']
    #allocation4 [shape = 's32[1]{0}', space=sflag, size = 0x4, scoped, tag = 'scoped memory for tpu_custom_call.1']
    #allocation5 [shape = 'u8[4096]{0}', space=vmem, size = 0x1000, scoped, tag = 'output window, operand 0, single buffered']
    #allocation6 [shape = 'u8[512]{0}', space=vmem, size = 0x400, scoped, tag = 'output window, operand 1, single buffered']
    #allocation7 [shape = 's32[1]{0}', space=sflag, size = 0x4, scoped, tag = 'scoped memory for tpu_custom_call.1']
    %10 = vsyncpa [#allocation3], 0
    %11 = vsyncpa [#allocation4], 0
    %12 = vsyncpa [#allocation7], 0
    // Predicated region
    $region2: #{tpu_custom_call.1} parent=1 // pred_check
      _
    $region3: #{tpu_custom_call.1} parent=1 // pred_check_branch
      %14 = sbr.rel (0) target = $region5
    $region4: #{tpu_custom_call.1} parent=1 // pred_region
      _
    $region5: #{tpu_custom_call.1} parent=1 // pred_fallthru
      _
    // Predicated region
    $region6: #{tpu_custom_call.1} parent=1 // pred_check
      _
    $region7: #{tpu_custom_call.1} parent=1 // pred_check_branch
      %16 = sbr.rel (0) target = $region9
    $region8: #{tpu_custom_call.1} parent=1 // pred_region
      _
    $region9: #{tpu_custom_call.1} parent=1 // pred_fallthru
      _
    // Predicated region
    $region10: #{tpu_custom_call.1} parent=1 // pred_check
      _
    $region11: #{tpu_custom_call.1} parent=1 // pred_check_branch
      %18 = sbr.rel (0) target = $region13
    $region12: #{tpu_custom_call.1} parent=1 // pred_region
      %s20 = ssub.s32 16, 16
      %21 = vsyncadd [#allocation3], %s20
      %s23 = sshll.u32 [#allocation2], 4
      %s24 = int_to_ptr.vmem [resolvable:$true] %s23
      %26 = dma.hbm_to_vmem [thread:$0]  %s2, 16, %s24, [#allocation3]
    $region13: #{tpu_custom_call.1} parent=1 // pred_fallthru
      _
    // Predicated region
    $region14: #{tpu_custom_call.1} parent=1 // pred_check
      _
    $region15: #{tpu_custom_call.1} parent=1 // pred_check_branch
      %28 = sbr.rel (0) target = $region17
    $region16: #{tpu_custom_call.1} parent=1 // pred_region
      %29 = dma.done [#allocation3], 16
    $region17: #{tpu_custom_call.1} parent=1 // pred_fallthru
      _
    %v30 = vld [vmem:[%s0] sm:$0xff]
    %v31 = vld [vmem:[%s1] sm:$0x1]
    %vm32 = vcmask 261120
    %v33 = vsel %vm32, %v30, 0.0
    %v34 = vrot.slane %v33, 4
    %v35 = vadd.f32 %v33, %v34
    %v36 = vrot.slane %v35, 2
    %v37 = vadd.f32 %v35, %v36
    %v38 = vrot.slane %v37, 1
    %v39 = vadd.f32 %v37, %v38
    %v40 = vmul.f32 %v39, 0.125
    %v42 = vlaneseq
    %v43 = vshrl.u32 %v42, 7
    %v44 = vsub.s32 0, %v43
    %v45 = vrot.slane %v31, %v44
    %v47 = vmul.f32 %v30, %v45
    %v48 = vsub.f32 1.0, %v31
    %v49 = vmul.f32 %v40, %v48
    %v50 = vlaneseq
    %v51 = vshrl.u32 %v50, 7
    %v52 = vsub.s32 0, %v51
    %v53 = vrot.slane %v49, %v52
    %v54 = vadd.f32 %v47, %v53
    %55 = vst.msk [vmem:[#allocation5] sm:$0xff] %vm32, %v54
    %v56 = vld [vmem:[#allocation2] sm:$0x1]
    %v57 = vmul.f32 %v56, 0.9
    %v58 = vmul.f32 %v40, 0.1
    %v59 = vadd.f32 %v57, %v58
    %vm60 = vcmask 253952
    %61 = vst.msk [vmem:[#allocation6] sm:$0x1] %vm60, %v59
    // Predicated region
    $region18: #{tpu_custom_call.1} parent=1 // pred_check
      _
    $region19: #{tpu_custom_call.1} parent=1 // pred_check_branch
      %63 = sbr.rel (0) target = $region21
    $region20: #{tpu_custom_call.1} parent=1 // pred_region
      %s65 = ssub.s32 128, 128
      %66 = vsyncadd [#allocation4], %s65
      %s68 = sshll.u32 [#allocation5], 4
      %s69 = int_to_ptr.vmem [resolvable:$true] %s68
      %71 = dma.vmem_to_hbm [thread:$0]  %s69, 128, %s3, [#allocation4]
    $region21: #{tpu_custom_call.1} parent=1 // pred_fallthru
      _
    // Predicated region
    $region22: #{tpu_custom_call.1} parent=1 // pred_check
      _
    $region23: #{tpu_custom_call.1} parent=1 // pred_check_branch
      %73 = sbr.rel (0) target = $region25
    $region24: #{tpu_custom_call.1} parent=1 // pred_region
      %s75 = ssub.s32 16, 16
      %76 = vsyncadd [#allocation7], %s75
      %s78 = sshll.u32 [#allocation6], 4
      %s79 = int_to_ptr.vmem [resolvable:$true] %s78
      %81 = dma.vmem_to_hbm [thread:$0]  %s79, 16, %s4, [#allocation7]
    $region25: #{tpu_custom_call.1} parent=1 // pred_fallthru
      _
    // Predicated region
    $region26: #{tpu_custom_call.1} parent=1 // pred_check
      _
    $region27: #{tpu_custom_call.1} parent=1 // pred_check_branch
      %83 = sbr.rel (0) target = $region29
    $region28: #{tpu_custom_call.1} parent=1 // pred_region
      %84 = dma.done [#allocation4], 128
    $region29: #{tpu_custom_call.1} parent=1 // pred_fallthru
      _
    // Predicated region
    $region30: #{tpu_custom_call.1} parent=1 // pred_check
      _
    $region31: #{tpu_custom_call.1} parent=1 // pred_check_branch
      %86 = sbr.rel (0) target = $region33
    $region32: #{tpu_custom_call.1} parent=1 // pred_region
      %87 = dma.done [#allocation7], 16
    $region33: #{tpu_custom_call.1} parent=1 // pred_fallthru
      _
    %88 = vsyncpa [#allocation3], 1
    %89 = vsyncpa [#allocation4], 1
    %90 = vsyncpa [#allocation7], 1

</llo_original>
